<compile_context>
chip_gen: v6e
topology: v6e:2x2x1
jax: 0.10.0
libtpu: 0.0.40
codegen_flags: <defaults>
</compile_context>

<pallas_src>
import math

import jax
import jax.numpy as jnp
from jax.experimental import pallas as pl
from jax.experimental.pallas import tpu as pltpu


# ----------------------------- Pallas kernel -------------------------------


def _head_kernel(x_ref, u_ref, z_ref, wf_ref, shift_ref, w2_ref, b2_ref, o_ref):
    """Fused PSP head for one (batch, pixel-tile) block.

    pp  = U_tile @ Z_batch                      (pyramid prior, small K)
    h   = x @ W_feats (bf16 MXU, f32 acc) + pp + bn_shift
    y   = relu(h)
    out = y @ W_final (bf16 MXU, f32 acc) + b_final
    """
    pp = jnp.dot(u_ref[...], z_ref[...], preferred_element_type=jnp.float32)
    h = jnp.dot(x_ref[...], wf_ref[...], preferred_element_type=jnp.float32)
    h = jnp.maximum(h + pp + shift_ref[...], 0.0)
    o_ref[...] = (
        jnp.dot(h.astype(jnp.bfloat16), w2_ref[...],
                preferred_element_type=jnp.float32)
        + b2_ref[...]
    )


def _pick_tile_p(hw, target):
    """Largest multiple-of-8 divisor of hw that is <= target, preferring >=2
    tiles (feeds v7x's two TensorCores) and >=128 rows (amortizes per-step
    overhead).  Returns None if no acceptable divisor exists (caller pads)."""
    start = (min(target, hw // 2) // 8) * 8
    min_tile = min(128, max(8, start))
    for t in range(start, 7, -8):
        if hw % t == 0 and t >= min_tile:
            return t
    return None


def psp_head(x3d, u2d, z3d, w_feats, shift, w_final, b_final, *, tile_target=1024):
    """Fused bottleneck + classifier over full-resolution pixels.

    x3d:     (N, HW, C)       bf16  channels-last feats slab
    u2d:     (HW, Ku)         f32   bilinear upsample matrix (position only)
    z3d:     (N, Ku, Cmid)    f32   stacked pooled pyramid bottleneck partials
    w_feats: (C, Cmid)        bf16  bottleneck weight (feats rows, BN folded)
    shift:   (1, Cmid)        f32   folded-BN shift
    w_final: (Cmid, Npad)     bf16  classifier weight, lane-padded
    b_final: (1, Npad)        f32   classifier bias, lane-padded
    Returns (N, HW, Npad) f32.
    """
    n, hw, cin = x3d.shape
    ku = u2d.shape[1]
    cmid = w_feats.shape[1]
    ncls_pad = w_final.shape[1]

    tile_p = _pick_tile_p(hw, tile_target)
    if tile_p is None:
        # Rarely-taken fallback for awkward HW: pad the pixel axis.
        tile_p = min(tile_target, pl.cdiv(hw, 8) * 8)
        hw_pad = pl.cdiv(hw, tile_p) * tile_p
        if hw_pad != hw:
            x3d = jnp.pad(x3d, ((0, 0), (0, hw_pad - hw), (0, 0)))
            u2d = jnp.pad(u2d, ((0, hw_pad - hw), (0, 0)))
    else:
        hw_pad = hw
    grid_hw = hw_pad // tile_p

    # VMEM sizing (conservatively assume double-buffering for everything plus
    # the f32 intermediates h/pp), capped at 32 MiB so v7x (64 MiB physical
    # per TensorCore) keeps headroom.  Weights use constant index_maps so they
    # are fetched once and not re-streamed across grid steps.
    bytes_x = tile_p * cin * 2
    bytes_u = tile_p * ku * 4
    bytes_z = ku * cmid * 4
    bytes_out = tile_p * ncls_pad * 4
    bytes_w = cin * cmid * 2 + cmid * ncls_pad * 2 + (cmid + ncls_pad) * 4
    vmem_need = 2 * (bytes_x + bytes_u + bytes_z + bytes_out + bytes_w) \
        + 2 * tile_p * cmid * 4
    vmem_limit = int(min(max(int(vmem_need * 1.25), 16 * 1024 * 1024),
                         32 * 1024 * 1024))

    flops = 2 * n * hw_pad * (ku * cmid + cin * cmid + cmid * ncls_pad)
    bytes_accessed = (
        n * hw_pad * cin * 2          # x (bf16)
        + n * hw_pad * ku * 4         # U (re-streamed per batch)
        + n * ku * cmid * 4           # Z
        + cin * cmid * 2              # W_feats (bf16)
        + cmid * ncls_pad * 2         # W_final (bf16)
        + (cmid + ncls_pad) * 4       # shift + bias
        + n * hw_pad * ncls_pad * 4   # output (f32)
    )

    out = pl.pallas_call(
        _head_kernel,
        out_shape=jax.ShapeDtypeStruct((n, hw_pad, ncls_pad), jnp.float32),
        grid=(n, grid_hw),
        in_specs=[
            pl.BlockSpec((None, tile_p, cin), lambda b, j: (b, j, 0)),   # x
            pl.BlockSpec((tile_p, ku), lambda b, j: (j, 0)),             # U
            pl.BlockSpec((None, ku, cmid), lambda b, j: (b, 0, 0)),      # Z
            # Grid-invariant operands (constant index_map -> fetched once).
            pl.BlockSpec((cin, cmid), lambda b, j: (0, 0)),
            pl.BlockSpec((1, cmid), lambda b, j: (0, 0)),
            pl.BlockSpec((cmid, ncls_pad), lambda b, j: (0, 0)),
            pl.BlockSpec((1, ncls_pad), lambda b, j: (0, 0)),
        ],
        out_specs=pl.BlockSpec((None, tile_p, ncls_pad), lambda b, j: (b, j, 0)),
        compiler_params=pltpu.CompilerParams(
            dimension_semantics=("parallel", "parallel"),
            vmem_limit_bytes=vmem_limit,
        ),
        cost_estimate=pl.CostEstimate(
            flops=flops, transcendentals=0, bytes_accessed=bytes_accessed),
    )(x3d, u2d, z3d, w_feats, shift, w_final, b_final)
    return out[:, :hw]


# ------------------------------- JAX glue -----------------------------------


def adaptive_avg_pool2d_nhwc(x, s):
    """Replicates torch.nn.AdaptiveAvgPool2d((s, s)). x: (N, H, W, C).
    Accumulates in f32 even for bf16 input."""
    _, h, w, _ = x.shape
    rows = []
    for i in range(s):
        h0 = (i * h) // s
        h1 = math.ceil((i + 1) * h / s)
        cols = []
        for j in range(s):
            w0 = (j * w) // s
            w1 = math.ceil((j + 1) * w / s)
            cols.append(jnp.mean(x[:, h0:h1, w0:w1, :], axis=(1, 2),
                                 dtype=jnp.float32))                  # (N, C)
        rows.append(jnp.stack(cols, axis=1))                          # (N, s, C)
    return jnp.stack(rows, axis=1)                                    # (N, s, s, C)


def pyramid_pools(x_nhwc, sizes):
    """All adaptive pools.  Reads the full feature map ONCE when the sizes
    nest (every size divides max(sizes) and H, W are divisible by it) —
    exactly the canonical (1,2,3,6) / 60x60 PSPNet configuration.  Falls back
    to exact per-scale adaptive pooling otherwise."""
    n, h, w, c = x_nhwc.shape
    smax = max(sizes)
    nested = (h % smax == 0) and (w % smax == 0) and all(smax % s == 0 for s in sizes)
    pools = {}
    if nested:
        base = x_nhwc.reshape(n, smax, h // smax, smax, w // smax, c)
        base = jnp.mean(base, axis=(2, 4), dtype=jnp.float32)         # (N, smax, smax, C)
        for s in set(sizes):
            r = smax // s
            pools[s] = jnp.mean(base.reshape(n, s, r, s, r, c), axis=(2, 4))
    else:
        for s in set(sizes):
            pools[s] = adaptive_avg_pool2d_nhwc(x_nhwc, s)
    return pools


def bilinear_matrix(in_size, out_size):
    """M (out, in) s.t. y = M @ x matches F.interpolate(mode='bilinear',
    align_corners=False) along one axis (the mode used in the module)."""
    if in_size == 1:
        return jnp.ones((out_size, 1), jnp.float32)
    scale = in_size / out_size
    dst = jnp.arange(out_size, dtype=jnp.float32)
    src = jnp.clip((dst + 0.5) * scale - 0.5, 0.0, None)
    i0 = jnp.minimum(jnp.floor(src).astype(jnp.int32), in_size - 1)
    frac = src - i0.astype(jnp.float32)
    i1 = jnp.minimum(i0 + 1, in_size - 1)
    m = jnp.zeros((out_size, in_size), jnp.float32)
    m = m.at[jnp.arange(out_size), i0].add(1.0 - frac)
    m = m.at[jnp.arange(out_size), i1].add(frac)
    return m


def fold_bn(gamma, beta, mean, var, eps=1e-5):
    scale = gamma / jnp.sqrt(var + eps)
    shift = beta - mean * scale
    return scale, shift


def init_params(key, in_features, out_features, sizes, n_classes):
    assert in_features % 4 == 0
    c4 = in_features // 4
    keys = jax.random.split(key, len(sizes) + 3)

    def rand_bn(k, c):
        k1, k2, k3, k4 = jax.random.split(k, 4)
        gamma = 1.0 + 0.1 * jax.random.normal(k1, (c,), jnp.float32)
        beta = 0.1 * jax.random.normal(k2, (c,), jnp.float32)
        mean = 0.1 * jax.random.normal(k3, (c,), jnp.float32)
        var = 1.0 + 0.1 * jax.random.uniform(k4, (c,), jnp.float32)
        return fold_bn(gamma, beta, mean, var)

    # Bottleneck BN; its scale is folded into every row-group of w_bottle.
    b_scale, b_shift = rand_bn(keys[-3], out_features)

    # Pyramid branches.  Bottleneck input channels are implicitly
    # in_features + len(sizes) * (in_features // 4).
    # (For a real checkpoint, split w_bottle row-wise: first
    #  len(sizes)*(C/4) rows -> stage groups in order, last C rows -> feats.)
    stages = []
    for si, _ in enumerate(sizes):
        k1, k2, k3 = jax.random.split(keys[si], 3)
        w_stage = 0.05 * jax.random.normal(k1, (in_features, c4), jnp.float32)
        s_scale, s_shift = rand_bn(k2, c4)
        w_bottle_g = 0.05 * jax.random.normal(k3, (c4, out_features), jnp.float32)
        stages.append({
            "w": w_stage * s_scale,             # stage conv, stage-BN scale folded
            "shift": s_shift,                   # (C/4,)
            "w_bottle": w_bottle_g * b_scale,   # (C/4, out), bottleneck-BN scale folded
        })

    k1, _ = jax.random.split(keys[-2], 2)
    w_bottle_feats = 0.05 * jax.random.normal(
        k1, (in_features, out_features), jnp.float32) * b_scale

    k1, k2 = jax.random.split(keys[-1], 2)
    w_final = 0.05 * jax.random.normal(k1, (out_features, n_classes), jnp.float32)
    b_final = 0.05 * jax.random.normal(k2, (1, n_classes), jnp.float32)

    return {
        "stages": stages,
        "w_bottle_feats": w_bottle_feats.astype(jnp.bfloat16),  # (C, out) bf16
        "bottle_shift": b_shift[None, :],                        # (1, out) f32
        "w_final": w_final,                                      # (out, ncls) f32
        "b_final": b_final,                                      # (1, ncls) f32
    }


def psp_forward(feats, params, sizes=(1, 2, 3, 6)):
    """feats: (N, C, H, W) NCHW float32. Returns (N, n_classes, H, W)."""
    n, c, h, w = feats.shape
    cmid = params["bottle_shift"].shape[1]

    # One channels-last bf16 slab: transpose + cast fused by XLA, reused for
    # both the pyramid pools (f32 accumulation) and the head kernel's x.
    feats_nhwc = jnp.transpose(feats, (0, 2, 3, 1)).astype(jnp.bfloat16)

    pools = pyramid_pools(feats_nhwc, sizes)

    # Pyramid branches (tiny, <= 36 pixels each) in plain JAX at pooled
    # resolution.  Z stacks their bottleneck partials; U holds the bilinear
    # upsample weights per full-resolution pixel.  The head kernel computes
    # U_tile @ Z_batch on the MXU, so no full-resolution prior ever hits HBM.
    z_parts, u_parts = [], []
    for s, sp in zip(sizes, params["stages"]):
        pooled = pools[s]                                             # (N, s, s, C) f32
        y = jnp.maximum(
            jnp.einsum("nijc,cm->nijm", pooled, sp["w"]) + sp["shift"], 0.0)
        z = jnp.einsum("nijm,mk->nijk", y, sp["w_bottle"])            # (N, s, s, Cmid)
        z_parts.append(z.reshape(n, s * s, cmid))
        mh = bilinear_matrix(s, h)                                    # (H, s)
        mw = bilinear_matrix(s, w)                                    # (W, s)
        u_parts.append(
            jnp.einsum("hi,wj->hwij", mh, mw).reshape(h * w, s * s))
    z3d = jnp.concatenate(z_parts, axis=1)                            # (N, Ku, Cmid)
    u2d = jnp.concatenate(u_parts, axis=1)                            # (HW, Ku)
    ku = z3d.shape[1]
    ku_pad = pl.cdiv(ku, 8) * 8                                       # sublane-friendly
    if ku_pad != ku:
        z3d = jnp.pad(z3d, ((0, 0), (0, ku_pad - ku), (0, 0)))
        u2d = jnp.pad(u2d, ((0, 0), (0, ku_pad - ku)))

    # Lane-dense classifier weights (pad n_classes up to 128, not beyond).
    w_final, b_final = params["w_final"], params["b_final"]
    ncls = w_final.shape[1]
    ncls_pad = pl.cdiv(ncls, 128) * 128
    w_final_p = jnp.pad(w_final, ((0, 0), (0, ncls_pad - ncls))).astype(jnp.bfloat16)
    b_final_p = jnp.pad(b_final, ((0, 0), (0, ncls_pad - ncls)))

    # Fused head Pallas kernel over (batch, pixel-tile) grid.
    x3d = feats_nhwc.reshape(n, h * w, c)
    out3d = psp_head(x3d, u2d, z3d, params["w_bottle_feats"],
                     params["bottle_shift"], w_final_p, b_final_p)
    out = out3d[:, :, :ncls].reshape(n, h, w, ncls)
    return jnp.transpose(out, (0, 3, 1, 2))                           # NCHW out


if __name__ == "__main__":
    key = jax.random.PRNGKey(0)
    k_x, k_p = jax.random.split(key)

    # Small shapes consistent with the module (in_features must be /4).
    N, C_IN, H, W = 2, 32, 16, 16
    OUT_FEATURES, SIZES, N_CLASSES = 16, (1, 2, 3, 6), 1

    feats = jax.random.normal(k_x, (N, C_IN, H, W), jnp.float32)
    params = init_params(k_p, C_IN, OUT_FEATURES, SIZES, N_CLASSES)

    fwd = jax.jit(psp_forward, static_argnames=("sizes",))
    out = fwd(feats, params, sizes=SIZES)
    out = jax.block_until_ready(out)
    assert out.shape == (N, N_CLASSES, H, W), out.shape
    assert out.dtype == jnp.float32
    print("KERNEL_OK")
</pallas_src>

<mosaic_0001>
module attributes {stable_mosaic.version = 11 : i64} {
  func.func private @main(%arg0: i32) attributes {dimension_semantics = [#tpu.dimension_semantics<core_parallel>], iteration_bounds = array<i64: 2>, tpu.core_type = #tpu.core_type<sc_scalar_subcore>, window_params = []} {
    return
  }
}

module attributes {stable_mosaic.version = 11 : i64} {
  func.func private @main(%arg0: i32) attributes {dimension_semantics = [#tpu.dimension_semantics<core_parallel>], iteration_bounds = array<i64: 2>, tpu.core_type = #tpu.core_type<sc_scalar_subcore>, window_params = []} {
    return
  }
}

module attributes {stable_mosaic.version = 11 : i64} {
  func.func @_head_kernel(%arg0: i32, %arg1: i32, %arg2: memref<1x128x32xbf16, #tpu.memory_space<vmem>>, %arg3: memref<128x56xf32, #tpu.memory_space<vmem>>, %arg4: memref<1x56x16xf32, #tpu.memory_space<vmem>>, %arg5: memref<32x16xbf16, #tpu.memory_space<vmem>>, %arg6: memref<1x16xf32, #tpu.memory_space<vmem>>, %arg7: memref<16x128xbf16, #tpu.memory_space<vmem>>, %arg8: memref<1x128xf32, #tpu.memory_space<vmem>>, %arg9: memref<1x128x128xf32, #tpu.memory_space<vmem>>) attributes {dimension_semantics = [#tpu.dimension_semantics<parallel>, #tpu.dimension_semantics<parallel>], iteration_bounds = array<i64: 2, 2>, scalar_prefetch = 0 : i64, scratch_operands = 0 : i64, tpu.core_type = #tpu.core_type<tc>, window_params = [{transform_indices = @transform_0, window_bounds = array<i64: 1, 128, 32>}, {transform_indices = @transform_1, window_bounds = array<i64: 128, 56>}, {transform_indices = @transform_2, window_bounds = array<i64: 1, 56, 16>}, {pipeline_mode = #tpu.pipeline_mode<synchronous>, transform_indices = @transform_3, window_bounds = array<i64: 32, 16>}, {pipeline_mode = #tpu.pipeline_mode<synchronous>, transform_indices = @transform_4, window_bounds = array<i64: 1, 16>}, {pipeline_mode = #tpu.pipeline_mode<synchronous>, transform_indices = @transform_5, window_bounds = array<i64: 16, 128>}, {pipeline_mode = #tpu.pipeline_mode<synchronous>, transform_indices = @transform_6, window_bounds = array<i64: 1, 128>}, {transform_indices = @transform_7, window_bounds = array<i64: 1, 128, 128>}]} {
    %c0 = arith.constant 0 : index
    %c0_0 = arith.constant 0 : index
    %0 = vector.load %arg3[%c0, %c0_0] : memref<128x56xf32, #tpu.memory_space<vmem>>, vector<128x56xf32>
    %c0_1 = arith.constant 0 : index
    %c0_2 = arith.constant 0 : index
    %c0_3 = arith.constant 0 : index
    %1 = vector.load %arg4[%c0_1, %c0_2, %c0_3] : memref<1x56x16xf32, #tpu.memory_space<vmem>>, vector<1x56x16xf32>
    %2 = vector.shape_cast %1 : vector<1x56x16xf32> to vector<56x16xf32>
    %cst = arith.constant dense<0.000000e+00> : vector<128x16xf32>
    %3 = tpu.matmul %0, %2, %cst {dimension_numbers = #tpu.dot_dimension_numbers<[1], [0], [0], [1], [0, 0, 1, 1], [], []>} : vector<128x56xf32>, vector<56x16xf32>, vector<128x16xf32> -> vector<128x16xf32>
    %c0_4 = arith.constant 0 : index
    %c0_5 = arith.constant 0 : index
    %c0_6 = arith.constant 0 : index
    %4 = vector.load %arg2[%c0_4, %c0_5, %c0_6] : memref<1x128x32xbf16, #tpu.memory_space<vmem>>, vector<1x128x32xbf16>
    %5 = vector.shape_cast %4 : vector<1x128x32xbf16> to vector<128x32xbf16>
    %c0_7 = arith.constant 0 : index
    %c0_8 = arith.constant 0 : index
    %6 = vector.load %arg5[%c0_7, %c0_8] : memref<32x16xbf16, #tpu.memory_space<vmem>>, vector<32x16xbf16>
    %cst_9 = arith.constant dense<0.000000e+00> : vector<128x16xf32>
    %7 = tpu.matmul %5, %6, %cst_9 {dimension_numbers = #tpu.dot_dimension_numbers<[1], [0], [0], [1], [0, 0, 1, 1], [], []>} : vector<128x32xbf16>, vector<32x16xbf16>, vector<128x16xf32> -> vector<128x16xf32>
    %8 = arith.addf %7, %3 : vector<128x16xf32>
    %c0_10 = arith.constant 0 : index
    %c0_11 = arith.constant 0 : index
    %9 = vector.load %arg6[%c0_10, %c0_11] : memref<1x16xf32, #tpu.memory_space<vmem>>, vector<1x16xf32>
    %10 = vector.broadcast %9 : vector<1x16xf32> to vector<128x16xf32>
    %11 = arith.addf %8, %10 : vector<128x16xf32>
    %cst_12 = arith.constant 0.000000e+00 : f32
    %12 = vector.broadcast %cst_12 : f32 to vector<128x16xf32>
    %13 = arith.maximumf %11, %12 : vector<128x16xf32>
    %14 = arith.truncf %13 : vector<128x16xf32> to vector<128x16xbf16>
    %c0_13 = arith.constant 0 : index
    %c0_14 = arith.constant 0 : index
    %15 = vector.load %arg7[%c0_13, %c0_14] : memref<16x128xbf16, #tpu.memory_space<vmem>>, vector<16x128xbf16>
    %cst_15 = arith.constant dense<0.000000e+00> : vector<128x128xf32>
    %16 = tpu.matmul %14, %15, %cst_15 {dimension_numbers = #tpu.dot_dimension_numbers<[1], [0], [0], [1], [0, 0, 1, 1], [], []>} : vector<128x16xbf16>, vector<16x128xbf16>, vector<128x128xf32> -> vector<128x128xf32>
    %c0_16 = arith.constant 0 : index
    %c0_17 = arith.constant 0 : index
    %17 = vector.load %arg8[%c0_16, %c0_17] : memref<1x128xf32, #tpu.memory_space<vmem>>, vector<1x128xf32>
    %18 = vector.broadcast %17 : vector<1x128xf32> to vector<128x128xf32>
    %19 = arith.addf %16, %18 : vector<128x128xf32>
    %c0_18 = arith.constant 0 : index
    %c0_19 = arith.constant 0 : index
    %c0_20 = arith.constant 0 : index
    %20 = vector.load %arg9[%c0_18, %c0_19, %c0_20] : memref<1x128x128xf32, #tpu.memory_space<vmem>>, vector<1x128x128xf32>
    %21 = vector.shape_cast %20 : vector<1x128x128xf32> to vector<128x128xf32>
    %22 = vector.shape_cast %19 : vector<128x128xf32> to vector<1x128x128xf32>
    tpu.vector_store %arg9[%c0_18, %c0_19, %c0_20], %22 {strides = array<i32>} : memref<1x128x128xf32, #tpu.memory_space<vmem>>, vector<1x128x128xf32>,
    return
  }
  func.func @transform_0(%arg0: i32, %arg1: i32) -> (i32, i32, i32) {
    %c0_i32 = arith.constant 0 : i32
    %c0_i32_0 = arith.constant 0 : i32
    return %arg0, %arg1, %c0_i32 : i32, i32, i32
  }
  func.func @transform_1(%arg0: i32, %arg1: i32) -> (i32, i32) {
    %c0_i32 = arith.constant 0 : i32
    %c0_i32_0 = arith.constant 0 : i32
    return %arg1, %c0_i32 : i32, i32
  }
  func.func @transform_2(%arg0: i32, %arg1: i32) -> (i32, i32, i32) {
    %c0_i32 = arith.constant 0 : i32
    %c0_i32_0 = arith.constant 0 : i32
    %c0_i32_1 = arith.constant 0 : i32
    return %arg0, %c0_i32, %c0_i32_0 : i32, i32, i32
  }
  func.func @transform_3(%arg0: i32, %arg1: i32) -> (i32, i32) {
    %c0_i32 = arith.constant 0 : i32
    %c0_i32_0 = arith.constant 0 : i32
    %c0_i32_1 = arith.constant 0 : i32
    return %c0_i32, %c0_i32_0 : i32, i32
  }
  func.func @transform_4(%arg0: i32, %arg1: i32) -> (i32, i32) {
    %c0_i32 = arith.constant 0 : i32
    %c0_i32_0 = arith.constant 0 : i32
    %c0_i32_1 = arith.constant 0 : i32
    return %c0_i32, %c0_i32_0 : i32, i32
  }
  func.func @transform_5(%arg0: i32, %arg1: i32) -> (i32, i32) {
    %c0_i32 = arith.constant 0 : i32
    %c0_i32_0 = arith.constant 0 : i32
    %c0_i32_1 = arith.constant 0 : i32
    return %c0_i32, %c0_i32_0 : i32, i32
  }
  func.func @transform_6(%arg0: i32, %arg1: i32) -> (i32, i32) {
    %c0_i32 = arith.constant 0 : i32
    %c0_i32_0 = arith.constant 0 : i32
    %c0_i32_1 = arith.constant 0 : i32
    return %c0_i32, %c0_i32_0 : i32, i32
  }
  func.func @transform_7(%arg0: i32, %arg1: i32) -> (i32, i32, i32) {
    %c0_i32 = arith.constant 0 : i32
    %c0_i32_0 = arith.constant 0 : i32
    return %arg0, %arg1, %c0_i32 : i32, i32, i32
  }
}

</mosaic_0001>

<llo_original>
// kernel: psp_forward.1
$region0: #{psp_forward.1}
  #allocation0 [shape = 'u32[]', space=smem, size = 0x4, offset = 0x4, fixed_abs, tag = 'smem constant byte address 0x4 - core index']
  #allocation1 [shape = 'u32[144,128]{1,0:T(1,128)}', space=vmem, size = 0x12000, scoped, tag = 'internal scratch']
  %s0 = inlined_call_operand.vmem [shape: bf16[2,256,32], index: 0, kind: input, shape index: {}]
  %s1 = inlined_call_operand.vmem [shape: f32[256,56], index: 1, kind: input, shape index: {}]
  %s2 = inlined_call_operand.vmem [shape: f32[2,56,16], index: 2, kind: input, shape index: {}]
  %s3 = inlined_call_operand.vmem [shape: bf16[32,16], index: 3, kind: input, shape index: {}]
  %s4 = inlined_call_operand.vmem [shape: f32[1,16], index: 4, kind: input, shape index: {}]
  %s5 = inlined_call_operand.vmem [shape: bf16[16,128], index: 5, kind: input, shape index: {}]
  %s6 = inlined_call_operand.vmem [shape: f32[1,128], index: 6, kind: input, shape index: {}]
  %s7 = inlined_call_operand.vmem [shape: f32[2,256,128], index: 7, kind: output, shape index: {}]
  %s8 = sld [smem:[#allocation0]]
  $region61: #{psp_forward.1} parent=0
    _
  %s10 = ssub.s32 1, %s8
  %s11 = scalar_select 0, %s10, %s8
  loop: start=0, step=1, limit=6
  $region2: #{psp_forward.1} parent=0 // loop_pre_header
    _
  $region3: #{psp_forward.1} parent=0 // loop_header
    %s13 = sphi 0, %s17
    %p14 = scmp.ge.s32.totalorder %s13, 6
    %s20 = sphi 0, %s32
    %s21 = sphi 0, %s28
    %s22 = sphi 0, %s20
    %s23 = sphi 0, %s21
    %s24 = sphi 0, %s22
    %s25 = sphi 0, %s23
    %s37 = sphi 0, %s39
    %s40 = sphi 0, %s37
    %s41 = sphi 0, %s40
    %s57 = sphi 0, %s41
    %s63 = sphi 0, %s65
    %s66 = sphi 0, %s63
    %s67 = sphi 0, %s66
    %s83 = sphi 0, %s67
    %s89 = sphi 0, %s91
    %s92 = sphi 0, %s89
    %s93 = sphi 0, %s92
    %s109 = sphi 0, %s93
    %s113 = sphi 0, %s113
    %s115 = sphi 0, %s113
    %s116 = sphi 0, %s115
    %s130 = sphi 0, %s116
    %s134 = sphi 0, %s134
    %s136 = sphi 0, %s134
    %s137 = sphi 0, %s136
    %s151 = sphi 0, %s137
    %s155 = sphi 0, %s155
    %s157 = sphi 0, %s155
    %s158 = sphi 0, %s157
    %s172 = sphi 0, %s158
    %s176 = sphi 0, %s176
    %s178 = sphi 0, %s176
    %s179 = sphi 0, %s178
    %s193 = sphi 0, %s179
    %s201 = sphi 0, %s203
    %s204 = sphi 0, %s201
    %s205 = sphi 0, %s204
    %s221 = sphi 0, %s205
  $region4: #{psp_forward.1} parent=0 // loop_header_branch
    %16 = sbr.rel (%p14) target = $region8
  $region5: #{psp_forward.1} parent=0 // loop_body
    %s18 = ssub.s32 %s13, 1
    %s19 = ssub.s32 %s13, 2
    %s26 = sadd.s32 1, %s21
    %p27 = scmp.ge.s32.totalorder %s26, 2
    %s28 = scalar_select %p27, 0, %s26
    %s29 = sadd.s32 1, %s20
    %s30 = scalar_select %p27, %s29, %s20
    %p31 = scmp.ge.s32.totalorder %s30, 2
    %s32 = scalar_select %p31, 0, %s30
    %s33 = ssub.s32 %s20, %s32
    %s34 = ssub.s32 %s21, %s28
    %s35 = sor.u32 %s33, %s34
    %p36 = scmp.eq.s32.totalorder %s35, 0
    %s38 = sadd.s32 %s37, 1
    %s39 = scalar_select %p36, %s37, %s38
    %p42 = pneg %p36
    %p43 = scmp.eq.s32.totalorder %s13, 3
    %p44 = por %p42, %p43
    %p45 = scmp.ne.s32.totalorder %s37, %s40
    %p46 = scmp.eq.s32.totalorder %s13, 0
    %p47 = por %p45, %p46
    %p48 = scmp.ne.s32.totalorder %s37, %s40
    %p49 = scmp.eq.s32.totalorder %s18, 3
    %p50 = por %p48, %p49
    %p51 = scmp.ne.s32.totalorder %s40, %s41
    %p52 = scmp.eq.s32.totalorder %s18, 0
    %p53 = por %p51, %p52
    %p54 = scmp.ne.s32.totalorder %s40, %s41
    %p55 = scmp.eq.s32.totalorder %s19, 3
    %p56 = por %p54, %p55
    %p58 = scmp.ne.s32.totalorder %s41, %s57
    %p59 = scmp.eq.s32.totalorder %s19, 0
    %p60 = por %p58, %p59
    %s61 = ssub.s32 %s21, %s28
    %p62 = scmp.eq.s32.totalorder %s61, 0
    %s64 = sadd.s32 %s63, 1
    %s65 = scalar_select %p62, %s63, %s64
    %p68 = pneg %p62
    %p69 = scmp.eq.s32.totalorder %s13, 3
    %p70 = por %p68, %p69
    %p71 = scmp.ne.s32.totalorder %s63, %s66
    %p72 = scmp.eq.s32.totalorder %s13, 0
    %p73 = por %p71, %p72
    %p74 = scmp.ne.s32.totalorder %s63, %s66
    %p75 = scmp.eq.s32.totalorder %s18, 3
    %p76 = por %p74, %p75
    %p77 = scmp.ne.s32.totalorder %s66, %s67
    %p78 = scmp.eq.s32.totalorder %s18, 0
    %p79 = por %p77, %p78
    %p80 = scmp.ne.s32.totalorder %s66, %s67
    %p81 = scmp.eq.s32.totalorder %s19, 3
    %p82 = por %p80, %p81
    %p84 = scmp.ne.s32.totalorder %s67, %s83
    %p85 = scmp.eq.s32.totalorder %s19, 0
    %p86 = por %p84, %p85
    %s87 = ssub.s32 %s20, %s32
    %p88 = scmp.eq.s32.totalorder %s87, 0
    %s90 = sadd.s32 %s89, 1
    %s91 = scalar_select %p88, %s89, %s90
    %p94 = pneg %p88
    %p95 = scmp.eq.s32.totalorder %s13, 3
    %p96 = por %p94, %p95
    %p97 = scmp.ne.s32.totalorder %s89, %s92
    %p98 = scmp.eq.s32.totalorder %s13, 0
    %p99 = por %p97, %p98
    %p100 = scmp.ne.s32.totalorder %s89, %s92
    %p101 = scmp.eq.s32.totalorder %s18, 3
    %p102 = por %p100, %p101
    %p103 = scmp.ne.s32.totalorder %s92, %s93
    %p104 = scmp.eq.s32.totalorder %s18, 0
    %p105 = por %p103, %p104
    %p106 = scmp.ne.s32.totalorder %s92, %s93
    %p107 = scmp.eq.s32.totalorder %s19, 3
    %p108 = por %p106, %p107
    %p110 = scmp.ne.s32.totalorder %s93, %s109
    %p111 = scmp.eq.s32.totalorder %s19, 0
    %p112 = por %p110, %p111
    %s114 = sadd.s32 %s113, 1
    %p117 = scmp.eq.s32.totalorder %s13, 3
    %p118 = scmp.ne.s32.totalorder %s113, %s115
    %p119 = scmp.eq.s32.totalorder %s13, 0
    %p120 = por %p118, %p119
    %p121 = scmp.ne.s32.totalorder %s113, %s115
    %p122 = scmp.eq.s32.totalorder %s18, 3
    %p123 = por %p121, %p122
    %p124 = scmp.ne.s32.totalorder %s115, %s116
    %p125 = scmp.eq.s32.totalorder %s18, 0
    %p126 = por %p124, %p125
    %p127 = scmp.ne.s32.totalorder %s115, %s116
    %p128 = scmp.eq.s32.totalorder %s19, 3
    %p129 = por %p127, %p128
    %p131 = scmp.ne.s32.totalorder %s116, %s130
    %p132 = scmp.eq.s32.totalorder %s19, 0
    %p133 = por %p131, %p132
    %s135 = sadd.s32 %s134, 1
    %p138 = scmp.eq.s32.totalorder %s13, 3
    %p139 = scmp.ne.s32.totalorder %s134, %s136
    %p140 = scmp.eq.s32.totalorder %s13, 0
    %p141 = por %p139, %p140
    %p142 = scmp.ne.s32.totalorder %s134, %s136
    %p143 = scmp.eq.s32.totalorder %s18, 3
    %p144 = por %p142, %p143
    %p145 = scmp.ne.s32.totalorder %s136, %s137
    %p146 = scmp.eq.s32.totalorder %s18, 0
    %p147 = por %p145, %p146
    %p148 = scmp.ne.s32.totalorder %s136, %s137
    %p149 = scmp.eq.s32.totalorder %s19, 3
    %p150 = por %p148, %p149
    %p152 = scmp.ne.s32.totalorder %s137, %s151
    %p153 = scmp.eq.s32.totalorder %s19, 0
    %p154 = por %p152, %p153
    %s156 = sadd.s32 %s155, 1
    %p159 = scmp.eq.s32.totalorder %s13, 3
    %p160 = scmp.ne.s32.totalorder %s155, %s157
    %p161 = scmp.eq.s32.totalorder %s13, 0
    %p162 = por %p160, %p161
    %p163 = scmp.ne.s32.totalorder %s155, %s157
    %p164 = scmp.eq.s32.totalorder %s18, 3
    %p165 = por %p163, %p164
    %p166 = scmp.ne.s32.totalorder %s157, %s158
    %p167 = scmp.eq.s32.totalorder %s18, 0
    %p168 = por %p166, %p167
    %p169 = scmp.ne.s32.totalorder %s157, %s158
    %p170 = scmp.eq.s32.totalorder %s19, 3
    %p171 = por %p169, %p170
    %p173 = scmp.ne.s32.totalorder %s158, %s172
    %p174 = scmp.eq.s32.totalorder %s19, 0
    %p175 = por %p173, %p174
    %s177 = sadd.s32 %s176, 1
    %p180 = scmp.eq.s32.totalorder %s13, 3
    %p181 = scmp.ne.s32.totalorder %s176, %s178
    %p182 = scmp.eq.s32.totalorder %s13, 0
    %p183 = por %p181, %p182
    %p184 = scmp.ne.s32.totalorder %s176, %s178
    %p185 = scmp.eq.s32.totalorder %s18, 3
    %p186 = por %p184, %p185
    %p187 = scmp.ne.s32.totalorder %s178, %s179
    %p188 = scmp.eq.s32.totalorder %s18, 0
    %p189 = por %p187, %p188
    %p190 = scmp.ne.s32.totalorder %s178, %s179
    %p191 = scmp.eq.s32.totalorder %s19, 3
    %p192 = por %p190, %p191
    %p194 = scmp.ne.s32.totalorder %s179, %s193
    %p195 = scmp.eq.s32.totalorder %s19, 0
    %p196 = por %p194, %p195
    %s197 = ssub.s32 %s20, %s32
    %s198 = ssub.s32 %s21, %s28
    %s199 = sor.u32 %s197, %s198
    %p200 = scmp.eq.s32.totalorder %s199, 0
    %s202 = sadd.s32 %s201, 1
    %s203 = scalar_select %p200, %s201, %s202
    %p206 = pneg %p200
    %p207 = scmp.eq.s32.totalorder %s13, 3
    %p208 = por %p206, %p207
    %p209 = scmp.ne.s32.totalorder %s201, %s204
    %p210 = scmp.eq.s32.totalorder %s13, 0
    %p211 = por %p209, %p210
    %p212 = scmp.ne.s32.totalorder %s201, %s204
    %p213 = scmp.eq.s32.totalorder %s18, 3
    %p214 = por %p212, %p213
    %p215 = scmp.ne.s32.totalorder %s204, %s205
    %p216 = scmp.eq.s32.totalorder %s18, 0
    %p217 = por %p215, %p216
    %p218 = scmp.ne.s32.totalorder %s204, %s205
    %p219 = scmp.eq.s32.totalorder %s19, 3
    %p220 = por %p218, %p219
    %p222 = scmp.ne.s32.totalorder %s205, %s221
    %p223 = scmp.eq.s32.totalorder %s19, 0
    %p224 = por %p222, %p223
    %p225 = scmp.le.s32.totalorder 1, %s13
    %p226 = scmp.lt.s32.totalorder %s13, 5
    %p227 = pnand %p225, %p226
    %p228 = pneg %p227
    // Predicated region
    $region9: #{psp_forward.1} parent=5 // pred_check
      _
    $region10: #{psp_forward.1} parent=5 // pred_check_branch
      %230 = sbr.rel (%p227) target = $region12
    $region11: #{psp_forward.1} parent=5 // pred_region
      %s231 = ssub.s32 %s13, 1
      // Predicated region
      $region13: #{psp_forward.1} parent=11 // pred_check
        %p232 = pneg %p126
      $region14: #{psp_forward.1} parent=11 // pred_check_branch
        %234 = sbr.rel (%p232) target = $region16
      $region15: #{psp_forward.1} parent=11 // pred_region
        _
      $region16: #{psp_forward.1} parent=11 // pred_fallthru
        _
      // Predicated region
      $region17: #{psp_forward.1} parent=11 // pred_check
        %p235 = pneg %p147
      $region18: #{psp_forward.1} parent=11 // pred_check_branch
        %237 = sbr.rel (%p235) target = $region20
      $region19: #{psp_forward.1} parent=11 // pred_region
        _
      $region20: #{psp_forward.1} parent=11 // pred_fallthru
        _
      // Predicated region
      $region21: #{psp_forward.1} parent=11 // pred_check
        %p238 = pneg %p168
      $region22: #{psp_forward.1} parent=11 // pred_check_branch
        %240 = sbr.rel (%p238) target = $region24
      $region23: #{psp_forward.1} parent=11 // pred_region
        _
      $region24: #{psp_forward.1} parent=11 // pred_fallthru
        _
      // Predicated region
      $region25: #{psp_forward.1} parent=11 // pred_check
        %p241 = pneg %p189
      $region26: #{psp_forward.1} parent=11 // pred_check_branch
        %243 = sbr.rel (%p241) target = $region28
      $region27: #{psp_forward.1} parent=11 // pred_region
        _
      $region28: #{psp_forward.1} parent=11 // pred_fallthru
        _
    $region12: #{psp_forward.1} parent=5 // pred_fallthru
      _
    %p244 = scmp.lt.s32.totalorder %s13, 4
    // Predicated region
    $region29: #{psp_forward.1} parent=5 // pred_check
      %p245 = pneg %p244
    $region30: #{psp_forward.1} parent=5 // pred_check_branch
      %247 = sbr.rel (%p245) target = $region32
    $region31: #{psp_forward.1} parent=5 // pred_region
      // Predicated region
      $region33: #{psp_forward.1} parent=31 // pred_check
        %p248 = pneg %p47
      $region34: #{psp_forward.1} parent=31 // pred_check_branch
        %250 = sbr.rel (%p248) target = $region36
      $region35: #{psp_forward.1} parent=31 // pred_region
        %s251 = smul.u32 16, %s21
        %p252 = scmp.lt.s32.totalorder %s20, 1
        %s253 = scalar_select %p252, %s20, 1
        %p254 = scmp.lt.s32.totalorder %s251, 31
        %s255 = scalar_select %p254, %s251, 31
        %s256 = smul.addr %s253, 32
        %s257 = sadd.s32 %s255, %s256
        %s258 = smul.addr %s257, 4
        %s259 = scalar_lea.vmem %s0, %s258
        %s260 = smul.u32 16, %s21
      $region36: #{psp_forward.1} parent=31 // pred_fallthru
        _
      // Predicated region
      $region37: #{psp_forward.1} parent=31 // pred_check
        %p261 = pneg %p73
      $region38: #{psp_forward.1} parent=31 // pred_check_branch
        %263 = sbr.rel (%p261) target = $region40
      $region39: #{psp_forward.1} parent=31 // pred_region
        %s264 = smul.u32 16, %s21
        %p265 = scmp.lt.s32.totalorder %s264, 31
        %s266 = scalar_select %p265, %s264, 31
        %s267 = smul.addr %s266, 8
        %s268 = scalar_lea.vmem %s1, %s267
        %s269 = smul.u32 16, %s21
      $region40: #{psp_forward.1} parent=31 // pred_fallthru
        _
      // Predicated region
      $region41: #{psp_forward.1} parent=31 // pred_check
        %p270 = pneg %p99
      $region42: #{psp_forward.1} parent=31 // pred_check_branch
        %272 = sbr.rel (%p270) target = $region44
      $region43: #{psp_forward.1} parent=31 // pred_region
        %p273 = scmp.lt.s32.totalorder %s20, 1
        %s274 = scalar_select %p273, %s20, 1
        %s275 = smul.addr %s274, 7
        %s276 = smul.addr %s275, 8
        %s277 = scalar_lea.vmem %s2, %s276
      $region44: #{psp_forward.1} parent=31 // pred_fallthru
        _
    $region32: #{psp_forward.1} parent=5 // pred_fallthru
      _
    %p278 = scmp.le.s32.totalorder 1, %s13
    %p279 = scmp.lt.s32.totalorder %s13, 5
    %p280 = pnand %p278, %p279
    %p281 = pneg %p280
    // Predicated region
    $region45: #{psp_forward.1} parent=5 // pred_check
      _
    $region46: #{psp_forward.1} parent=5 // pred_check_branch
      %283 = sbr.rel (%p280) target = $region48
    $region47: #{psp_forward.1} parent=5 // pred_region
      %s284 = ssub.s32 %s13, 1
      %s285 = smul.u32 16, %s23
      %p286 = scmp.lt.s32.totalorder %s22, 1
      %s287 = scalar_select %p286, %s22, 1
      %p288 = scmp.lt.s32.totalorder %s285, 31
      %s289 = scalar_select %p288, %s285, 31
      %s290 = smul.addr %s287, 32
      %s291 = sadd.s32 %s289, %s290
      %s292 = smul.addr %s291, 4
      %s293 = scalar_lea.vmem %s0, %s292
      %p294 = pneg %p53
      %p295 = pneg %p50
      %s296 = smul.u32 16, %s23
      %p297 = scmp.lt.s32.totalorder %s296, 31
      %s298 = scalar_select %p297, %s296, 31
      %s299 = smul.addr %s298, 8
      %s300 = scalar_lea.vmem %s1, %s299
      %p301 = pneg %p79
      %p302 = pneg %p76
      %p303 = scmp.lt.s32.totalorder %s22, 1
      %s304 = scalar_select %p303, %s22, 1
      %s305 = smul.addr %s304, 7
      %s306 = smul.addr %s305, 8
      %s307 = scalar_lea.vmem %s2, %s306
      %p308 = pneg %p105
      %p309 = pneg %p102
      %p310 = pneg %p126
      %p311 = pneg %p123
      %p312 = pneg %p147
      %p313 = pneg %p144
      %p314 = pneg %p168
      %p315 = pneg %p165
      %p316 = pneg %p189
      %p317 = pneg %p186
      %p318 = pneg %p217
      %p319 = pneg %p214
      %s320 = smul.u32 16, %s23
      %p321 = scmp.lt.s32.totalorder %s22, 1
      %s322 = scalar_select %p321, %s22, 1
      %p323 = scmp.lt.s32.totalorder %s320, 31
      %s324 = scalar_select %p323, %s320, 31
      %s325 = smul.addr %s322, 32
      %s326 = sadd.s32 %s324, %s325
      %s327 = smul.addr %s326, 8
      %s328 = scalar_lea.vmem %s7, %s327
      %s329 = smul.u32 16, %s23
      %p330 = scmp.lt.s32.totalorder %s22, 1
      %s331 = scalar_select %p330, %s22, 1
      %p332 = scmp.lt.s32.totalorder %s329, 31
      %s333 = scalar_select %p332, %s329, 31
      %s334 = smul.addr %s331, 32
      %s335 = sadd.s32 %s333, %s334
      %s336 = smul.addr %s335, 4
      %s337 = scalar_lea.vmem %s0, %s336
      %s338 = smul.u32 16, %s23
      %s339 = smul.u32 16, %s23
      %p340 = scmp.lt.s32.totalorder %s339, 31
      %s341 = scalar_select %p340, %s339, 31
      %s342 = smul.addr %s341, 8
      %s343 = scalar_lea.vmem %s1, %s342
      %s344 = smul.u32 16, %s23
      %p345 = scmp.lt.s32.totalorder %s22, 1
      %s346 = scalar_select %p345, %s22, 1
      %s347 = smul.addr %s346, 7
      %s348 = smul.addr %s347, 8
      %s349 = scalar_lea.vmem %s2, %s348
      %s350 = smul.u32 16, %s23
      %p351 = scmp.lt.s32.totalorder %s22, 1
      %s352 = scalar_select %p351, %s22, 1
      %p353 = scmp.lt.s32.totalorder %s350, 31
      %s354 = scalar_select %p353, %s350, 31
      %s355 = smul.addr %s352, 32
      %s356 = sadd.s32 %s354, %s355
      %s357 = smul.addr %s356, 8
      %s358 = scalar_lea.vmem %s7, %s357
      %s359 = smul.u32 16, %s23
      %v361 = vld [vmem:[%s343] sm:$0xff]
      %v362 = vld [vmem:[%s343 + $0x8] sm:$0xff]
      %v363 = vld [vmem:[%s343 + $0x10] sm:$0xff]
      %v364 = vld [vmem:[%s343 + $0x18] sm:$0xff]
      %v365 = vld [vmem:[%s343 + $0x20] sm:$0xff]
      %v366 = vld [vmem:[%s343 + $0x28] sm:$0xff]
      %v367 = vld [vmem:[%s343 + $0x30] sm:$0xff]
      %v368 = vld [vmem:[%s343 + $0x38] sm:$0xff]
      %v369 = vld [vmem:[%s343 + $0x40] sm:$0xff]
      %v370 = vld [vmem:[%s343 + $0x48] sm:$0xff]
      %v371 = vld [vmem:[%s343 + $0x50] sm:$0xff]
      %v372 = vld [vmem:[%s343 + $0x58] sm:$0xff]
      %v373 = vld [vmem:[%s343 + $0x60] sm:$0xff]
      %v374 = vld [vmem:[%s343 + $0x68] sm:$0xff]
      %v375 = vld [vmem:[%s343 + $0x70] sm:$0xff]
      %v376 = vld [vmem:[%s343 + $0x78] sm:$0xff]
      %v377 = vld [vmem:[%s349] sm:$0xff]
      %v378 = vld [vmem:[%s349 + $0x8] sm:$0xff]
      %v379 = vld [vmem:[%s349 + $0x10] sm:$0xff]
      %v380 = vld [vmem:[%s349 + $0x18] sm:$0xff]
      %v381 = vld [vmem:[%s349 + $0x20] sm:$0xff]
      %v382 = vld [vmem:[%s349 + $0x28] sm:$0xff]
      %v383 = vld [vmem:[%s349 + $0x30] sm:$0xff]
      %vm384 = vcmask 457728
      %v386 = vsel %vm384, %v361, 0
      %v389 = vsel %vm384, %v362, 0
      %v392 = vsel %vm384, %v363, 0
      %v395 = vsel %vm384, %v364, 0
      %v398 = vsel %vm384, %v365, 0
      %v401 = vsel %vm384, %v366, 0
      %v404 = vsel %vm384, %v367, 0
      %v407 = vsel %vm384, %v368, 0
      %v410 = vsel %vm384, %v369, 0
      %v413 = vsel %vm384, %v370, 0
      %v416 = vsel %vm384, %v371, 0
      %v419 = vsel %vm384, %v372, 0
      %v422 = vsel %vm384, %v373, 0
      %v425 = vsel %vm384, %v374, 0
      %v428 = vsel %vm384, %v375, 0
      %v431 = vsel %vm384, %v376, 0
      %433 = vmatprep.subr.mxu0 0.0
      %434 = vmatpush1.msra.mxu0 0.0
      %435 = vmatprep.subr.mxu0 0.0
      %436 = vmatpush1.msra.mxu0 0.0
      %437 = vmatprep.subr.mxu0 0.0
      %438 = vmatpush1.msra.mxu0 0.0
      %439 = vmatprep.subr.mxu0 0.0
      %440 = vmatpush1.msra.mxu0 0.0
      %441 = vmatprep.subr.mxu0 0.0
      %442 = vmatpush1.msra.mxu0 0.0
      %443 = vmatprep.subr.mxu0 0.0
      %444 = vmatpush1.msra.mxu0 0.0
      %445 = vmatprep.subr.mxu0 0.0
      %446 = vmatpush1.msra.mxu0 0.0
      %447 = vmatprep.subr.mxu0 0.0
      %448 = vmatpush1.msra.mxu0 0.0
      %449 = vmatprep.subr.mxu0 0.0
      %450 = vmatpush1.msra.mxu0 0.0
      %451 = vmatprep.subr.mxu0 0.0
      %452 = vmatpush1.msra.mxu0 %v383
      %453 = vmatprep.subr.mxu0 0.0
      %454 = vmatpush1.msra.mxu0 %v382
      %455 = vmatprep.subr.mxu0 0.0
      %456 = vmatpush1.msra.mxu0 %v381
      %457 = vmatprep.subr.mxu0 0.0
      %458 = vmatpush1.msra.mxu0 %v380
      %459 = vmatprep.subr.mxu0 0.0
      %460 = vmatpush1.msra.mxu0 %v379
      %461 = vmatprep.subr.mxu0 0.0
      %462 = vmatpush1.msra.mxu0 %v378
      %463 = vmatprep.subr.mxu0 0.0
      %464 = vmatpush1.msra.mxu0 %v377
      %465 = vmatprep.subr.mxu0 0.0
      %466 = vmatpush2.msra.mxu0 0.0
      %467 = vmatprep.subr.mxu0 0.0
      %468 = vmatpush2.msra.mxu0 0.0
      %469 = vmatprep.subr.mxu0 0.0
      %470 = vmatpush2.msra.mxu0 0.0
      %471 = vmatprep.subr.mxu0 0.0
      %472 = vmatpush2.msra.mxu0 0.0
      %473 = vmatprep.subr.mxu0 0.0
      %474 = vmatpush2.msra.mxu0 0.0
      %475 = vmatprep.subr.mxu0 0.0
      %476 = vmatpush2.msra.mxu0 0.0
      %477 = vmatprep.subr.mxu0 0.0
      %478 = vmatpush2.msra.mxu0 0.0
      %479 = vmatprep.subr.mxu0 0.0
      %480 = vmatpush2.msra.mxu0 0.0
      %481 = vmatprep.subr.mxu0 0.0
      %482 = vmatpush2.msra.mxu0 0.0
      %483 = vmatprep.subr.mxu0 0.0
      %484 = vmatpush2.msra.mxu0 0.0
      %485 = vmatprep.subr.mxu0 0.0
      %486 = vmatpush2.msra.mxu0 0.0
      %487 = vmatprep.subr.mxu0 0.0
      %488 = vmatpush2.msra.mxu0 0.0
      %489 = vmatprep.subr.mxu0 0.0
      %490 = vmatpush2.msra.mxu0 0.0
      %491 = vmatprep.subr.mxu0 0.0
      %492 = vmatpush2.msra.mxu0 0.0
      %493 = vmatprep.subr.mxu0 0.0
      %494 = vmatpush2.msra.mxu0 0.0
      %495 = vmatprep.subr.mxu0 0.0
      %496 = vmatpush2.msra.mxu0 0.0
      %497 = vmatprep.mubr.f32.mxu0 0.0
      %498 = vmatmul.mubr.f32.gmra.mxu0 %v386
      %v499 = vpop.f32.mrf.mxu0
      %v500 = vadd.f32 0.0, %v499
      %v501 = vpop.f32.mrf.mxu0
      %502 = vmatprep.mubr.f32.mxu0 0.0
      %503 = vmatmul.mubr.f32.gmra.mxu0 %v389
      %v504 = vpop.f32.mrf.mxu0
      %v505 = vadd.f32 0.0, %v504
      %v506 = vpop.f32.mrf.mxu0
      %507 = vmatprep.mubr.f32.mxu0 0.0
      %508 = vmatmul.mubr.f32.gmra.mxu0 %v392
      %v509 = vpop.f32.mrf.mxu0
      %v510 = vadd.f32 0.0, %v509
      %v511 = vpop.f32.mrf.mxu0
      %512 = vmatprep.mubr.f32.mxu0 0.0
      %513 = vmatmul.mubr.f32.gmra.mxu0 %v395
      %v514 = vpop.f32.mrf.mxu0
      %v515 = vadd.f32 0.0, %v514
      %v516 = vpop.f32.mrf.mxu0
      %517 = vmatprep.mubr.f32.mxu0 0.0
      %518 = vmatmul.mubr.f32.gmra.mxu0 %v398
      %v519 = vpop.f32.mrf.mxu0
      %v520 = vadd.f32 0.0, %v519
      %v521 = vpop.f32.mrf.mxu0
      %522 = vmatprep.mubr.f32.mxu0 0.0
      %523 = vmatmul.mubr.f32.gmra.mxu0 %v401
      %v524 = vpop.f32.mrf.mxu0
      %v525 = vadd.f32 0.0, %v524
      %v526 = vpop.f32.mrf.mxu0
      %527 = vmatprep.mubr.f32.mxu0 0.0
      %528 = vmatmul.mubr.f32.gmra.mxu0 %v404
      %v529 = vpop.f32.mrf.mxu0
      %v530 = vadd.f32 0.0, %v529
      %v531 = vpop.f32.mrf.mxu0
      %532 = vmatprep.mubr.f32.mxu0 0.0
      %533 = vmatmul.mubr.f32.gmra.mxu0 %v407
      %v534 = vpop.f32.mrf.mxu0
      %v535 = vadd.f32 0.0, %v534
      %v536 = vpop.f32.mrf.mxu0
      %537 = vmatprep.mubr.f32.mxu0 0.0
      %538 = vmatmul.mubr.f32.gmra.mxu0 %v410
      %v539 = vpop.f32.mrf.mxu0
      %v540 = vadd.f32 0.0, %v539
      %v541 = vpop.f32.mrf.mxu0
      %542 = vmatprep.mubr.f32.mxu0 0.0
      %543 = vmatmul.mubr.f32.gmra.mxu0 %v413
      %v544 = vpop.f32.mrf.mxu0
      %v545 = vadd.f32 0.0, %v544
      %v546 = vpop.f32.mrf.mxu0
      %547 = vmatprep.mubr.f32.mxu0 0.0
      %548 = vmatmul.mubr.f32.gmra.mxu0 %v416
      %v549 = vpop.f32.mrf.mxu0
      %v550 = vadd.f32 0.0, %v549
      %v551 = vpop.f32.mrf.mxu0
      %552 = vmatprep.mubr.f32.mxu0 0.0
      %553 = vmatmul.mubr.f32.gmra.mxu0 %v419
      %v554 = vpop.f32.mrf.mxu0
      %v555 = vadd.f32 0.0, %v554
      %v556 = vpop.f32.mrf.mxu0
      %557 = vmatprep.mubr.f32.mxu0 0.0
      %558 = vmatmul.mubr.f32.gmra.mxu0 %v422
      %v559 = vpop.f32.mrf.mxu0
      %v560 = vadd.f32 0.0, %v559
      %v561 = vpop.f32.mrf.mxu0
      %562 = vmatprep.mubr.f32.mxu0 0.0
      %563 = vmatmul.mubr.f32.gmra.mxu0 %v425
      %v564 = vpop.f32.mrf.mxu0
      %v565 = vadd.f32 0.0, %v564
      %v566 = vpop.f32.mrf.mxu0
      %567 = vmatprep.mubr.f32.mxu0 0.0
      %568 = vmatmul.mubr.f32.gmra.mxu0 %v428
      %v569 = vpop.f32.mrf.mxu0
      %v570 = vadd.f32 0.0, %v569
      %v571 = vpop.f32.mrf.mxu0
      %572 = vmatprep.mubr.f32.mxu0 0.0
      %573 = vmatmul.mubr.f32.gmra.mxu0 %v431
      %v574 = vpop.f32.mrf.mxu0
      %v575 = vadd.f32 0.0, %v574
      %v576 = vpop.f32.mrf.mxu0
      %577 = vdwg.mxu0
      %v578 = vld [vmem:[%s337] sm:$0xf]
      %v579 = vld [vmem:[%s337 + $0x4] sm:$0xf]
      %v580 = vld [vmem:[%s337 + $0x8] sm:$0xf]
      %v581 = vld [vmem:[%s337 + $0xc] sm:$0xf]
      %v582 = vld [vmem:[%s337 + $0x10] sm:$0xf]
      %v583 = vld [vmem:[%s337 + $0x14] sm:$0xf]
      %v584 = vld [vmem:[%s337 + $0x18] sm:$0xf]
      %v585 = vld [vmem:[%s337 + $0x1c] sm:$0xf]
      %v586 = vld [vmem:[%s337 + $0x20] sm:$0xf]
      %v587 = vld [vmem:[%s337 + $0x24] sm:$0xf]
      %v588 = vld [vmem:[%s337 + $0x28] sm:$0xf]
      %v589 = vld [vmem:[%s337 + $0x2c] sm:$0xf]
      %v590 = vld [vmem:[%s337 + $0x30] sm:$0xf]
      %v591 = vld [vmem:[%s337 + $0x34] sm:$0xf]
      %v592 = vld [vmem:[%s337 + $0x38] sm:$0xf]
      %v593 = vld [vmem:[%s337 + $0x3c] sm:$0xf]
      %v594 = vld [vmem:[%s3] sm:$0xf]
      %v595 = vld [vmem:[%s3 + $0x4] sm:$0xf]
      %v596 = vld [vmem:[%s3 + $0x8] sm:$0xf]
      %v597 = vld [vmem:[%s3 + $0xc] sm:$0xf]
      %v614 = vunpack.c.l.b16 %v578
      %v615 = vunpack.c.l.b16 %v579
      %v616 = vunpack.c.l.b16 %v580
      %v617 = vunpack.c.l.b16 %v581
      %v618 = vunpack.c.l.b16 %v582
      %v619 = vunpack.c.l.b16 %v583
      %v620 = vunpack.c.l.b16 %v584
      %v621 = vunpack.c.l.b16 %v585
      %v622 = vunpack.c.l.b16 %v586
      %v623 = vunpack.c.l.b16 %v587
      %v624 = vunpack.c.l.b16 %v588
      %v625 = vunpack.c.l.b16 %v589
      %v626 = vunpack.c.l.b16 %v590
      %v627 = vunpack.c.l.b16 %v591
      %v628 = vunpack.c.l.b16 %v592
      %v629 = vunpack.c.l.b16 %v593
      %v630 = vpack.c.b16 %v615, %v614
      %v631 = vpack.c.b16 %v617, %v616
      %v632 = vpack.c.b16 %v619, %v618
      %v633 = vpack.c.b16 %v621, %v620
      %v634 = vpack.c.b16 %v623, %v622
      %v635 = vpack.c.b16 %v625, %v624
      %v636 = vpack.c.b16 %v627, %v626
      %v637 = vpack.c.b16 %v629, %v628
      %v642 = vunpack.c.l.b16 %v594
      %v643 = vunpack.c.l.b16 %v595
      %v644 = vunpack.c.l.b16 %v596
      %v645 = vunpack.c.l.b16 %v597
      %v646 = vpack.c.b16 %v643, %v642
      %v647 = vpack.c.b16 %v645, %v644
      %vm650 = vcmask 261120
      %v652 = vsel %vm650, %v630, 0
      %v655 = vsel %vm650, %v631, 0
      %v658 = vsel %vm650, %v632, 0
      %v661 = vsel %vm650, %v633, 0
      %v664 = vsel %vm650, %v634, 0
      %v667 = vsel %vm650, %v635, 0
      %v670 = vsel %vm650, %v636, 0
      %v673 = vsel %vm650, %v637, 0
      %675 = vmatprep.subr.bf16.mxu0 0
      %676 = vmatpush1.bf16.msra.mxu0 0
      %677 = vmatprep.subr.bf16.mxu0 0
      %678 = vmatpush1.bf16.msra.mxu0 0
      %679 = vmatprep.subr.bf16.mxu0 0
      %680 = vmatpush1.bf16.msra.mxu0 0
      %681 = vmatprep.subr.bf16.mxu0 0
      %682 = vmatpush1.bf16.msra.mxu0 0
      %683 = vmatprep.subr.bf16.mxu0 0
      %684 = vmatpush1.bf16.msra.mxu0 0
      %685 = vmatprep.subr.bf16.mxu0 0
      %686 = vmatpush1.bf16.msra.mxu0 0
      %687 = vmatprep.subr.bf16.mxu0 0
      %688 = vmatpush1.bf16.msra.mxu0 %v647
      %689 = vmatprep.subr.bf16.mxu0 0
      %690 = vmatpush1.bf16.msra.mxu0 %v646
      %691 = vmatprep.subr.bf16.mxu0 0
      %692 = vmatpush2.bf16.msra.mxu0 0
      %693 = vmatprep.subr.bf16.mxu0 0
      %694 = vmatpush2.bf16.msra.mxu0 0
      %695 = vmatprep.subr.bf16.mxu0 0
      %696 = vmatpush2.bf16.msra.mxu0 0
      %697 = vmatprep.subr.bf16.mxu0 0
      %698 = vmatpush2.bf16.msra.mxu0 0
      %699 = vmatprep.subr.bf16.mxu0 0
      %700 = vmatpush2.bf16.msra.mxu0 0
      %701 = vmatprep.subr.bf16.mxu0 0
      %702 = vmatpush2.bf16.msra.mxu0 0
      %703 = vmatprep.subr.bf16.mxu0 0
      %704 = vmatpush2.bf16.msra.mxu0 0
      %705 = vmatprep.subr.bf16.mxu0 0
      %706 = vmatpush2.bf16.msra.mxu0 0
      %707 = vmatprep.mubr.bf16.mxu0 0
      %708 = vmatmul.mubr.bf16.gmra.mxu0 %v652
      %v709 = vpop.f32.mrf.mxu0
      %v710 = vadd.f32 %v500, %v709
      %v711 = vpop.f32.mrf.mxu0
      %v712 = vpop.f32.mrf.mxu0
      %v713 = vadd.f32 %v505, %v712
      %v714 = vpop.f32.mrf.mxu0
      %715 = vmatprep.mubr.bf16.mxu0 0
      %716 = vmatmul.mubr.bf16.gmra.mxu0 %v655
      %v717 = vpop.f32.mrf.mxu0
      %v718 = vadd.f32 %v510, %v717
      %v719 = vpop.f32.mrf.mxu0
      %v720 = vpop.f32.mrf.mxu0
      %v721 = vadd.f32 %v515, %v720
      %v722 = vpop.f32.mrf.mxu0
      %723 = vmatprep.mubr.bf16.mxu0 0
      %724 = vmatmul.mubr.bf16.gmra.mxu0 %v658
      %v725 = vpop.f32.mrf.mxu0
      %v726 = vadd.f32 %v520, %v725
      %v727 = vpop.f32.mrf.mxu0
      %v728 = vpop.f32.mrf.mxu0
      %v729 = vadd.f32 %v525, %v728
      %v730 = vpop.f32.mrf.mxu0
      %731 = vmatprep.mubr.bf16.mxu0 0
      %732 = vmatmul.mubr.bf16.gmra.mxu0 %v661
      %v733 = vpop.f32.mrf.mxu0
      %v734 = vadd.f32 %v530, %v733
      %v735 = vpop.f32.mrf.mxu0
      %v736 = vpop.f32.mrf.mxu0
      %v737 = vadd.f32 %v535, %v736
      %v738 = vpop.f32.mrf.mxu0
      %739 = vmatprep.mubr.bf16.mxu0 0
      %740 = vmatmul.mubr.bf16.gmra.mxu0 %v664
      %v741 = vpop.f32.mrf.mxu0
      %v742 = vadd.f32 %v540, %v741
      %v743 = vpop.f32.mrf.mxu0
      %v744 = vpop.f32.mrf.mxu0
      %v745 = vadd.f32 %v545, %v744
      %v746 = vpop.f32.mrf.mxu0
      %747 = vmatprep.mubr.bf16.mxu0 0
      %748 = vmatmul.mubr.bf16.gmra.mxu0 %v667
      %v749 = vpop.f32.mrf.mxu0
      %v750 = vadd.f32 %v550, %v749
      %v751 = vpop.f32.mrf.mxu0
      %v752 = vpop.f32.mrf.mxu0
      %v753 = vadd.f32 %v555, %v752
      %v754 = vpop.f32.mrf.mxu0
      %755 = vmatprep.mubr.bf16.mxu0 0
      %756 = vmatmul.mubr.bf16.gmra.mxu0 %v670
      %v757 = vpop.f32.mrf.mxu0
      %v758 = vadd.f32 %v560, %v757
      %v759 = vpop.f32.mrf.mxu0
      %v760 = vpop.f32.mrf.mxu0
      %v761 = vadd.f32 %v565, %v760
      %v762 = vpop.f32.mrf.mxu0
      %763 = vmatprep.mubr.bf16.mxu0 0
      %764 = vmatmul.mubr.bf16.gmra.mxu0 %v673
      %v765 = vpop.f32.mrf.mxu0
      %v766 = vadd.f32 %v570, %v765
      %v767 = vpop.f32.mrf.mxu0
      %v768 = vpop.f32.mrf.mxu0
      %v769 = vadd.f32 %v575, %v768
      %v770 = vpop.f32.mrf.mxu0
      %771 = vdwg.mxu0
      %v772 = vld [vmem:[%s4] sm:$0x1]
      %v774 = vlaneseq
      %v775 = vshrl.u32 %v774, 7
      %v776 = vsub.s32 0, %v775
      %v777 = vrot.slane %v772, %v776
      %v779 = vadd.f32 %v710, %v777
      %v780 = vadd.f32 %v713, %v777
      %v781 = vadd.f32 %v718, %v777
      %v782 = vadd.f32 %v721, %v777
      %v783 = vadd.f32 %v726, %v777
      %v784 = vadd.f32 %v729, %v777
      %v785 = vadd.f32 %v734, %v777
      %v786 = vadd.f32 %v737, %v777
      %v787 = vadd.f32 %v742, %v777
      %v788 = vadd.f32 %v745, %v777
      %v789 = vadd.f32 %v750, %v777
      %v790 = vadd.f32 %v753, %v777
      %v791 = vadd.f32 %v758, %v777
      %v792 = vadd.f32 %v761, %v777
      %v793 = vadd.f32 %v766, %v777
      %v794 = vadd.f32 %v769, %v777
      %v795 = vmax.f32 %v779, 0.0
      %v796 = vmax.f32 %v780, 0.0
      %v797 = vmax.f32 %v781, 0.0
      %v798 = vmax.f32 %v782, 0.0
      %v799 = vmax.f32 %v783, 0.0
      %v800 = vmax.f32 %v784, 0.0
      %v801 = vmax.f32 %v785, 0.0
      %v802 = vmax.f32 %v786, 0.0
      %v803 = vmax.f32 %v787, 0.0
      %v804 = vmax.f32 %v788, 0.0
      %v805 = vmax.f32 %v789, 0.0
      %v806 = vmax.f32 %v790, 0.0
      %v807 = vmax.f32 %v791, 0.0
      %v808 = vmax.f32 %v792, 0.0
      %v809 = vmax.f32 %v793, 0.0
      %v810 = vmax.f32 %v794, 0.0
      %v811 = vpack.c.bf16 %v796, %v795
      %v812 = vpack.c.bf16 %v798, %v797
      %v813 = vpack.c.bf16 %v800, %v799
      %v814 = vpack.c.bf16 %v802, %v801
      %v815 = vpack.c.bf16 %v804, %v803
      %v816 = vpack.c.bf16 %v806, %v805
      %v817 = vpack.c.bf16 %v808, %v807
      %v818 = vpack.c.bf16 %v810, %v809
      %v819 = vld [vmem:[%s5] sm:$0xf]
      %v820 = vld [vmem:[%s5 + $0x4] sm:$0xf]
      %v821 = vld [vmem:[%s6] sm:$0x1]
      %v823 = vlaneseq
      %v824 = vshrl.u32 %v823, 7
      %v825 = vsub.s32 0, %v824
      %v826 = vrot.slane %v821, %v825
      %v830 = vunpack.c.l.b16 %v819
      %v831 = vunpack.c.l.b16 %v820
      %v832 = vpack.c.b16 %v831, %v830
      %vm834 = vcmask 130048
      %v836 = vsel %vm834, %v811, 0
      %v839 = vsel %vm834, %v812, 0
      %v842 = vsel %vm834, %v813, 0
      %v845 = vsel %vm834, %v814, 0
      %v848 = vsel %vm834, %v815, 0
      %v851 = vsel %vm834, %v816, 0
      %v854 = vsel %vm834, %v817, 0
      %v857 = vsel %vm834, %v818, 0
      %859 = vmatprep.subr.bf16.mxu0 0
      %860 = vmatpush1.bf16.msra.mxu0 0
      %861 = vmatprep.subr.bf16.mxu0 0
      %862 = vmatpush1.bf16.msra.mxu0 0
      %863 = vmatprep.subr.bf16.mxu0 0
      %864 = vmatpush1.bf16.msra.mxu0 0
      %865 = vmatprep.subr.bf16.mxu0 0
      %866 = vmatpush1.bf16.msra.mxu0 0
      %867 = vmatprep.subr.bf16.mxu0 0
      %868 = vmatpush1.bf16.msra.mxu0 0
      %869 = vmatprep.subr.bf16.mxu0 0
      %870 = vmatpush1.bf16.msra.mxu0 0
      %871 = vmatprep.subr.bf16.mxu0 0
      %872 = vmatpush1.bf16.msra.mxu0 0
      %873 = vmatprep.subr.bf16.mxu0 0
      %874 = vmatpush1.bf16.msra.mxu0 %v832
      %875 = vmatprep.subr.bf16.mxu0 0
      %876 = vmatpush2.bf16.msra.mxu0 0
      %877 = vmatprep.subr.bf16.mxu0 0
      %878 = vmatpush2.bf16.msra.mxu0 0
      %879 = vmatprep.subr.bf16.mxu0 0
      %880 = vmatpush2.bf16.msra.mxu0 0
      %881 = vmatprep.subr.bf16.mxu0 0
      %882 = vmatpush2.bf16.msra.mxu0 0
      %883 = vmatprep.subr.bf16.mxu0 0
      %884 = vmatpush2.bf16.msra.mxu0 0
      %885 = vmatprep.subr.bf16.mxu0 0
      %886 = vmatpush2.bf16.msra.mxu0 0
      %887 = vmatprep.subr.bf16.mxu0 0
      %888 = vmatpush2.bf16.msra.mxu0 0
      %889 = vmatprep.subr.bf16.mxu0 0
      %890 = vmatpush2.bf16.msra.mxu0 0
      %891 = vmatprep.mubr.bf16.mxu0 0
      %892 = vmatmul.mubr.bf16.gmra.mxu0 %v836
      %v893 = vpop.f32.mrf.mxu0
      %v894 = vadd.f32 %v826, %v893
      %v895 = vpop.f32.mrf.mxu0
      %v896 = vpop.f32.mrf.mxu0
      %v897 = vadd.f32 %v826, %v896
      %v898 = vpop.f32.mrf.mxu0
      %899 = vmatprep.mubr.bf16.mxu0 0
      %900 = vmatmul.mubr.bf16.gmra.mxu0 %v839
      %v901 = vpop.f32.mrf.mxu0
      %v902 = vadd.f32 %v826, %v901
      %v903 = vpop.f32.mrf.mxu0
      %v904 = vpop.f32.mrf.mxu0
      %v905 = vadd.f32 %v826, %v904
      %v906 = vpop.f32.mrf.mxu0
      %907 = vmatprep.mubr.bf16.mxu0 0
      %908 = vmatmul.mubr.bf16.gmra.mxu0 %v842
      %v909 = vpop.f32.mrf.mxu0
      %v910 = vadd.f32 %v826, %v909
      %v911 = vpop.f32.mrf.mxu0
      %v912 = vpop.f32.mrf.mxu0
      %v913 = vadd.f32 %v826, %v912
      %v914 = vpop.f32.mrf.mxu0
      %915 = vmatprep.mubr.bf16.mxu0 0
      %916 = vmatmul.mubr.bf16.gmra.mxu0 %v845
      %v917 = vpop.f32.mrf.mxu0
      %v918 = vadd.f32 %v826, %v917
      %v919 = vpop.f32.mrf.mxu0
      %v920 = vpop.f32.mrf.mxu0
      %v921 = vadd.f32 %v826, %v920
      %v922 = vpop.f32.mrf.mxu0
      %923 = vmatprep.mubr.bf16.mxu0 0
      %924 = vmatmul.mubr.bf16.gmra.mxu0 %v848
      %v925 = vpop.f32.mrf.mxu0
      %v926 = vadd.f32 %v826, %v925
      %v927 = vpop.f32.mrf.mxu0
      %v928 = vpop.f32.mrf.mxu0
      %v929 = vadd.f32 %v826, %v928
      %v930 = vpop.f32.mrf.mxu0
      %931 = vmatprep.mubr.bf16.mxu0 0
      %932 = vmatmul.mubr.bf16.gmra.mxu0 %v851
      %v933 = vpop.f32.mrf.mxu0
      %v934 = vadd.f32 %v826, %v933
      %v935 = vpop.f32.mrf.mxu0
      %v936 = vpop.f32.mrf.mxu0
      %v937 = vadd.f32 %v826, %v936
      %v938 = vpop.f32.mrf.mxu0
      %939 = vmatprep.mubr.bf16.mxu0 0
      %940 = vmatmul.mubr.bf16.gmra.mxu0 %v854
      %v941 = vpop.f32.mrf.mxu0
      %v942 = vadd.f32 %v826, %v941
      %v943 = vpop.f32.mrf.mxu0
      %v944 = vpop.f32.mrf.mxu0
      %v945 = vadd.f32 %v826, %v944
      %v946 = vpop.f32.mrf.mxu0
      %947 = vmatprep.mubr.bf16.mxu0 0
      %948 = vmatmul.mubr.bf16.gmra.mxu0 %v857
      %v949 = vpop.f32.mrf.mxu0
      %v950 = vadd.f32 %v826, %v949
      %v951 = vpop.f32.mrf.mxu0
      %v952 = vpop.f32.mrf.mxu0
      %v953 = vadd.f32 %v826, %v952
      %v954 = vpop.f32.mrf.mxu0
      %955 = vdwg.mxu0
      %956 = vst [vmem:[%s358] sm:$0xff] %v894
      %957 = vst [vmem:[%s358 + $0x8] sm:$0xff] %v897
      %958 = vst [vmem:[%s358 + $0x10] sm:$0xff] %v902
      %959 = vst [vmem:[%s358 + $0x18] sm:$0xff] %v905
      %960 = vst [vmem:[%s358 + $0x20] sm:$0xff] %v910
      %961 = vst [vmem:[%s358 + $0x28] sm:$0xff] %v913
      %962 = vst [vmem:[%s358 + $0x30] sm:$0xff] %v918
      %963 = vst [vmem:[%s358 + $0x38] sm:$0xff] %v921
      %964 = vst [vmem:[%s358 + $0x40] sm:$0xff] %v926
      %965 = vst [vmem:[%s358 + $0x48] sm:$0xff] %v929
      %966 = vst [vmem:[%s358 + $0x50] sm:$0xff] %v934
      %967 = vst [vmem:[%s358 + $0x58] sm:$0xff] %v937
      %968 = vst [vmem:[%s358 + $0x60] sm:$0xff] %v942
      %969 = vst [vmem:[%s358 + $0x68] sm:$0xff] %v945
      %970 = vst [vmem:[%s358 + $0x70] sm:$0xff] %v950
      %971 = vst [vmem:[%s358 + $0x78] sm:$0xff] %v953
      %s972 = smul.u32 16, %s23
      %p973 = scmp.lt.s32.totalorder %s22, 1
      %s974 = scalar_select %p973, %s22, 1
      %p975 = scmp.lt.s32.totalorder %s972, 31
      %s976 = scalar_select %p975, %s972, 31
      %s977 = smul.addr %s974, 32
      %s978 = sadd.s32 %s976, %s977
      %s979 = smul.addr %s978, 8
      %s980 = scalar_lea.vmem %s7, %s979
      // Predicated region
      $region49: #{psp_forward.1} parent=47 // pred_check
        %p981 = pneg %p214
      $region50: #{psp_forward.1} parent=47 // pred_check_branch
        %983 = sbr.rel (%p981) target = $region52
      $region51: #{psp_forward.1} parent=47 // pred_region
        %s984 = smul.u32 16, %s23
      $region52: #{psp_forward.1} parent=47 // pred_fallthru
        _
    $region48: #{psp_forward.1} parent=5 // pred_fallthru
      _
    %p985 = scmp.le.s32.totalorder 2, %s13
    // Predicated region
    $region53: #{psp_forward.1} parent=5 // pred_check
      %p986 = pneg %p985
    $region54: #{psp_forward.1} parent=5 // pred_check_branch
      %988 = sbr.rel (%p986) target = $region56
    $region55: #{psp_forward.1} parent=5 // pred_region
      %s989 = ssub.s32 %s13, 2
      // Predicated region
      $region57: #{psp_forward.1} parent=55 // pred_check
        %p990 = pneg %p220
      $region58: #{psp_forward.1} parent=55 // pred_check_branch
        %992 = sbr.rel (%p990) target = $region60
      $region59: #{psp_forward.1} parent=55 // pred_region
        %s993 = smul.u32 16, %s25
        %p994 = scmp.lt.s32.totalorder %s24, 1
        %s995 = scalar_select %p994, %s24, 1
        %p996 = scmp.lt.s32.totalorder %s993, 31
        %s997 = scalar_select %p996, %s993, 31
        %s998 = smul.addr %s995, 32
        %s999 = sadd.s32 %s997, %s998
        %s1000 = smul.addr %s999, 8
        %s1001 = scalar_lea.vmem %s7, %s1000
      $region60: #{psp_forward.1} parent=55 // pred_fallthru
        _
    $region56: #{psp_forward.1} parent=5 // pred_fallthru
      _
  $region6: #{psp_forward.1} parent=0 // loop_footer
    %s17 = sadd.s32 1, %s13
  $region7: #{psp_forward.1} parent=0 // loop_footer_branch
    %12 = sbr.rel target = $region3
  $region8: #{psp_forward.1} parent=0 // loop_exit
    _

</llo_original>
